<compile_context>
chip_gen: v6e
topology: v6e:2x2x1
jax: 0.10.0
libtpu: 0.0.40
codegen_flags: <defaults>
</compile_context>

<pallas_src>
import math
import functools

import jax
import jax.numpy as jnp
from jax.experimental import pallas as pl
from jax.experimental.pallas import tpu as pltpu


# --------------------------------------------------------------------------
# Parameter construction (mirrors SVD_Layer.__init__)
# --------------------------------------------------------------------------
def _svd_layer_dims(input_size, output_size, singular_factor=1):
    assert output_size == 4 * input_size or input_size == 4 * output_size, \
        "Only MLP factor 4 is allowed"
    size = input_size if output_size > input_size else output_size
    table = {
        64:  ([4, 4, 4],  [8, 4, 8]),
        96:  ([4, 6, 4],  [8, 6, 8]),
        128: ([4, 8, 4],  [8, 8, 8]),
        192: ([4, 12, 4], [8, 12, 8]),
        256: ([4, 16, 4], [8, 16, 8]),
        384: ([8, 6, 8],  [16, 6, 16]),
        512: ([8, 8, 8],  [16, 8, 16]),
        768: ([8, 12, 8], [16, 12, 16]),
    }
    inputs, outputs = table[size]
    if output_size < input_size:
        inputs, outputs = outputs, inputs
    a = inputs[2] * outputs[2]
    b = inputs[0] * outputs[0] + inputs[1] * outputs[1]
    c = -1 * input_size * output_size
    nsv = (-1 * b + math.sqrt(b ** 2 - 4 * a * c)) / (2 * a)
    nsv = int(nsv // singular_factor)
    return inputs, outputs, nsv


def _xavier_uniform(key, shape, gain):
    rf = 1
    for d in shape[2:]:
        rf *= d
    fan_in = shape[1] * rf
    fan_out = shape[0] * rf
    bound = gain * math.sqrt(6.0 / (fan_in + fan_out))
    return jax.random.uniform(key, shape, dtype=jnp.float32,
                              minval=-bound, maxval=bound)


def init_svd_layer_params(key, input_size, output_size, singular_factor=1):
    inputs, outputs, nsv = _svd_layer_dims(input_size, output_size, singular_factor)
    k1, k2, k3 = jax.random.split(key, 3)
    gain = math.sqrt(2.0)
    W_1 = _xavier_uniform(k1, (inputs[0], outputs[0], nsv), gain)
    W_2 = _xavier_uniform(k2, (nsv, inputs[1], outputs[1], nsv), gain)
    W_3 = _xavier_uniform(k3, (nsv, inputs[2], outputs[2]), gain)
    bias = jnp.zeros((output_size,), dtype=jnp.float32)
    return dict(W_1=W_1, W_2=W_2, W_3=W_3, b=bias,
                inputs=inputs, outputs=outputs, nsv=nsv)


# --------------------------------------------------------------------------
# One-time W materialization (hoisted off the per-call hot path)
# --------------------------------------------------------------------------
def prepare_svd_layer(params, compute_dtype=jnp.bfloat16):
    """Reconstruct the dense (K, N) weight once per parameter update."""
    W = jnp.einsum("ios,sIOS,Sab->iIaoOb",
                   params["W_1"], params["W_2"], params["W_3"])
    i, I, a, o, O, b = W.shape
    K, N = i * I * a, o * O * b
    W = W.reshape(K, N).astype(compute_dtype)
    b2d = params["b"].astype(jnp.float32).reshape(1, N)
    return {"W": W, "b2d": b2d}


# --------------------------------------------------------------------------
# Pallas kernel: y = x @ W + b
# --------------------------------------------------------------------------
def _svd_matmul_kernel(x_ref, w_ref, b_ref, o_ref):
    # x_ref: (tm, K)  w_ref: (K, tn)  b_ref: (1, tn) f32  o_ref: (tm, tn)
    acc = jnp.dot(x_ref[...], w_ref[...], preferred_element_type=jnp.float32)
    o_ref[...] = (acc + b_ref[...]).astype(o_ref.dtype)


def _round_up(a, b):
    return ((a + b - 1) // b) * b


def _pick_tn(N, max_tn=1024):
    """Largest lane-aligned (multiple of 128) divisor of N that is <= max_tn,
    or the full N when N itself is small enough."""
    if N <= max_tn:
        return N
    for cand in range(max_tn, 127, -128):
        if N % cand == 0:
            return cand
    return N  # fallback: keep full N resident


def svd_layer_forward(x, prepared, *, tm=512, max_tn=1024, out_dtype=None):
    """x: (..., K) -> (..., N). `prepared` comes from prepare_svd_layer."""
    W, b2d = prepared["W"], prepared["b2d"]
    K, N = W.shape
    assert x.shape[-1] == K, "last dim of x must equal input_size"
    if out_dtype is None:
        out_dtype = x.dtype

    lead = x.shape[:-1]
    M = math.prod(lead) if lead else 1
    x2d = x.reshape(M, K).astype(W.dtype)

    # M tiling: big tiles, pad instead of asserting divisibility.
    tm_eff = min(tm, _round_up(max(M, 8), 8))
    tm_eff = _round_up(tm_eff, 8)
    M_pad = _round_up(M, tm_eff)
    if M_pad != M:
        x2d = jnp.pad(x2d, ((0, M_pad - M), (0, 0)))

    # N tiling: lane-aligned, bounded per-step VMEM (matters on v7x / v5e).
    tn = _pick_tn(N, max_tn)
    m_blocks = M_pad // tm_eff
    n_blocks = N // tn
    # TODO(synk): for down-projection entries with N < 128 (e.g. 64/96), output
    # stores are lane-masked; folding two m-blocks into one lane-dense write
    # would recover the remaining store bandwidth.

    in_bytes = jnp.dtype(W.dtype).itemsize
    out_bytes = jnp.dtype(out_dtype).itemsize
    cost = pl.CostEstimate(
        flops=2 * M_pad * K * N,
        transcendentals=0,
        bytes_accessed=M_pad * K * in_bytes + K * N * in_bytes
                       + N * 4 + M_pad * N * out_bytes)

    # VMEM budget: x (double-buffered), W/bias (single- or double-buffered),
    # output (double-buffered); leave generous headroom, cap conservatively.
    w_bufs = 1 if n_blocks == 1 else 2
    vmem_need = (2 * tm_eff * K * in_bytes
                 + w_bufs * (K * tn * in_bytes + tn * 4)
                 + 2 * tm_eff * tn * out_bytes)
    vmem_limit = int(min(max(2 * vmem_need, 16 << 20), 48 << 20))

    # Grid-invariant operands (single N block) don't need double-buffering.
    inv_kwargs = {"pipeline_mode": pl.Buffered(1)} if n_blocks == 1 else {}

    y2d = pl.pallas_call(
        _svd_matmul_kernel,
        out_shape=jax.ShapeDtypeStruct((M_pad, N), out_dtype),
        grid_spec=pltpu.PrefetchScalarGridSpec(
            num_scalar_prefetch=0,
            grid=(m_blocks, n_blocks),
            in_specs=[
                pl.BlockSpec((tm_eff, K), lambda m, n: (m, 0)),
                pl.BlockSpec((K, tn), lambda m, n: (0, n), **inv_kwargs),
                pl.BlockSpec((1, tn), lambda m, n: (0, n), **inv_kwargs),
            ],
            out_specs=pl.BlockSpec((tm_eff, tn), lambda m, n: (m, n)),
        ),
        compiler_params=pltpu.CompilerParams(
            dimension_semantics=("parallel", "parallel"),
            vmem_limit_bytes=vmem_limit),
        cost_estimate=cost,
    )(x2d, W, b2d)

    if M_pad != M:
        y2d = y2d[:M]
    return y2d.reshape(*lead, N)


# --------------------------------------------------------------------------
# Demo
# --------------------------------------------------------------------------
if __name__ == "__main__":
    input_size, output_size = 64, 256          # MLP factor 4, table entry size=64
    batch, seq = 2, 8

    key = jax.random.PRNGKey(0)
    k_param, k_x = jax.random.split(key)
    params = init_svd_layer_params(k_param, input_size, output_size)
    x = jax.random.normal(k_x, (batch, seq, input_size), dtype=jnp.float32)

    # Plain-JAX f32 reference.
    W_ref = jnp.einsum("ios,sIOS,Sab->iIaoOb",
                       params["W_1"], params["W_2"], params["W_3"])
    W_ref = W_ref.reshape(input_size, output_size)
    y_ref = (x.reshape(-1, input_size) @ W_ref + params["b"]).reshape(
        batch, seq, output_size)

    # 1) f32 compute path: exact check.
    prep_f32 = prepare_svd_layer(params, compute_dtype=jnp.float32)
    fwd_f32 = jax.jit(functools.partial(svd_layer_forward, prepared=prep_f32))
    y32 = jax.block_until_ready(fwd_f32(x))
    assert y32.shape == (batch, seq, output_size)
    assert jnp.allclose(y32, y_ref, atol=1e-4, rtol=1e-4)

    # 2) bf16 compute path (default / production): looser tolerance.
    prep_bf16 = prepare_svd_layer(params)      # bf16 W, cached
    fwd_bf16 = jax.jit(functools.partial(svd_layer_forward, prepared=prep_bf16))
    y16 = jax.block_until_ready(fwd_bf16(x))
    assert y16.shape == (batch, seq, output_size)
    rel_err = jnp.max(jnp.abs(y16.astype(jnp.float32) - y_ref)) / (
        jnp.max(jnp.abs(y_ref)) + 1e-6)
    assert float(rel_err) < 3e-2, f"bf16 rel err too large: {rel_err}"

    print("KERNEL_OK")
</pallas_src>

<mosaic_0001>
module attributes {stable_mosaic.version = 11 : i64} {
  func.func @_svd_matmul_kernel(%arg0: i32, %arg1: i32, %arg2: memref<16x64xf32, #tpu.memory_space<vmem>>, %arg3: memref<64x256xf32, #tpu.memory_space<vmem>>, %arg4: memref<1x256xf32, #tpu.memory_space<vmem>>, %arg5: memref<16x256xf32, #tpu.memory_space<vmem>>) attributes {dimension_semantics = [#tpu.dimension_semantics<parallel>, #tpu.dimension_semantics<parallel>], iteration_bounds = array<i64: 1, 1>, scalar_prefetch = 0 : i64, scratch_operands = 0 : i64, tpu.core_type = #tpu.core_type<tc>, window_params = [{transform_indices = @transform_0, window_bounds = array<i64: 16, 64>}, {pipeline_mode = #tpu.pipeline_mode<synchronous>, transform_indices = @transform_1, window_bounds = array<i64: 64, 256>}, {pipeline_mode = #tpu.pipeline_mode<synchronous>, transform_indices = @transform_2, window_bounds = array<i64: 1, 256>}, {transform_indices = @transform_3, window_bounds = array<i64: 16, 256>}]} {
    %c0 = arith.constant 0 : index
    %c0_0 = arith.constant 0 : index
    %0 = vector.load %arg2[%c0, %c0_0] : memref<16x64xf32, #tpu.memory_space<vmem>>, vector<16x64xf32>
    %c0_1 = arith.constant 0 : index
    %c0_2 = arith.constant 0 : index
    %1 = vector.load %arg3[%c0_1, %c0_2] : memref<64x256xf32, #tpu.memory_space<vmem>>, vector<64x256xf32>
    %cst = arith.constant dense<0.000000e+00> : vector<16x256xf32>
    %2 = tpu.matmul %0, %1, %cst {dimension_numbers = #tpu.dot_dimension_numbers<[1], [0], [0], [1], [0, 0, 1, 1], [], []>} : vector<16x64xf32>, vector<64x256xf32>, vector<16x256xf32> -> vector<16x256xf32>
    %c0_3 = arith.constant 0 : index
    %c0_4 = arith.constant 0 : index
    %3 = vector.load %arg4[%c0_3, %c0_4] : memref<1x256xf32, #tpu.memory_space<vmem>>, vector<1x256xf32>
    %4 = vector.broadcast %3 : vector<1x256xf32> to vector<16x256xf32>
    %5 = arith.addf %2, %4 : vector<16x256xf32>
    %c0_5 = arith.constant 0 : index
    %c0_6 = arith.constant 0 : index
    %6 = vector.load %arg5[%c0_5, %c0_6] : memref<16x256xf32, #tpu.memory_space<vmem>>, vector<16x256xf32>
    tpu.vector_store %arg5[%c0_5, %c0_6], %5 {strides = array<i32>} : memref<16x256xf32, #tpu.memory_space<vmem>>, vector<16x256xf32>,
    return
  }
  func.func @transform_0(%arg0: i32, %arg1: i32) -> (i32, i32) {
    %c0_i32 = arith.constant 0 : i32
    %c0_i32_0 = arith.constant 0 : i32
    return %arg0, %c0_i32 : i32, i32
  }
  func.func @transform_1(%arg0: i32, %arg1: i32) -> (i32, i32) {
    %c0_i32 = arith.constant 0 : i32
    %c0_i32_0 = arith.constant 0 : i32
    return %c0_i32, %arg1 : i32, i32
  }
  func.func @transform_2(%arg0: i32, %arg1: i32) -> (i32, i32) {
    %c0_i32 = arith.constant 0 : i32
    %c0_i32_0 = arith.constant 0 : i32
    return %c0_i32, %arg1 : i32, i32
  }
  func.func @transform_3(%arg0: i32, %arg1: i32) -> (i32, i32) {
    %c0_i32 = arith.constant 0 : i32
    return %arg0, %arg1 : i32, i32
  }
}

</mosaic_0001>

<llo_original>
// kernel: svd_layer_forward.1
$region0: #{svd_layer_forward.1}
  #allocation0 [shape = 'u32[]', space=smem, size = 0x4, offset = 0x4, fixed_abs, tag = 'smem constant byte address 0x4 - core index']
  #allocation1 [shape = 'u32[144,128]{1,0:T(1,128)}', space=vmem, size = 0x12000, scoped, tag = 'internal scratch']
  %s0 = inlined_call_operand.hbm [shape: f32[16,64], index: 0, kind: input, shape index: {}]
  %s1 = inlined_call_operand.hbm [shape: f32[64,256], index: 1, kind: input, shape index: {}]
  %s2 = inlined_call_operand.vmem [shape: f32[1,256], index: 2, kind: input, shape index: {}]
  %s3 = inlined_call_operand.hbm [shape: f32[16,256], index: 3, kind: output, shape index: {}]
  %s4 = sld [smem:[#allocation0]]
  $region30: #{svd_layer_forward.1} parent=0
    _
  %s6 = ssub.s32 1, %s4
  %s7 = scalar_select 0, %s6, %s4
  $region1: #{svd_layer_forward.1} parent=0
    #allocation2 [shape = 'u8[8192]{0}', space=vmem, size = 0x2000, scoped, tag = 'input window, operand 0, single buffered']
    #allocation3 [shape = 's32[1]{0}', space=sflag, size = 0x4, scoped, tag = 'scoped memory for svd_layer_forward.1']
    #allocation4 [shape = 's32[1]{0}', space=sflag, size = 0x4, scoped, tag = 'scoped memory for svd_layer_forward.1']
    #allocation5 [shape = 'u8[65536]{0}', space=vmem, size = 0x10000, scoped, tag = 'input window, operand 1, single buffered']
    #allocation6 [shape = 's32[1]{0}', space=sflag, size = 0x4, scoped, tag = 'scoped memory for svd_layer_forward.1']
    #allocation7 [shape = 'u8[16384]{0}', space=vmem, size = 0x4000, scoped, tag = 'output window, operand 0, single buffered']
    %8 = vsyncpa [#allocation3], 0
    %9 = vsyncpa [#allocation6], 0
    %10 = vsyncpa [#allocation4], 0
    // Predicated region
    $region2: #{svd_layer_forward.1} parent=1 // pred_check
      _
    $region3: #{svd_layer_forward.1} parent=1 // pred_check_branch
      %12 = sbr.rel (0) target = $region5
    $region4: #{svd_layer_forward.1} parent=1 // pred_region
      %s14 = ssub.s32 256, 256
      %15 = vsyncadd [#allocation3], %s14
      %s16 = sshll.u32 [#allocation2], 4
      %s17 = int_to_ptr.vmem [resolvable:$true] %s16
      %22 = dma.hbm_to_vmem [thread:$0]  %s0, 256, %s17, [#allocation3], 128, 128, 8
    $region5: #{svd_layer_forward.1} parent=1 // pred_fallthru
      _
    // Predicated region
    $region6: #{svd_layer_forward.1} parent=1 // pred_check
      _
    $region7: #{svd_layer_forward.1} parent=1 // pred_check_branch
      %24 = sbr.rel (0) target = $region9
    $region8: #{svd_layer_forward.1} parent=1 // pred_region
      %s26 = ssub.s32 2048, 2048
      %27 = vsyncadd [#allocation6], %s26
      %s28 = sshll.u32 [#allocation5], 4
      %s29 = int_to_ptr.vmem [resolvable:$true] %s28
      %34 = dma.hbm_to_vmem [thread:$0]  %s1, 2048, %s29, [#allocation6], 256, 256, 16
    $region9: #{svd_layer_forward.1} parent=1 // pred_fallthru
      _
    // Predicated region
    $region10: #{svd_layer_forward.1} parent=1 // pred_check
      _
    $region11: #{svd_layer_forward.1} parent=1 // pred_check_branch
      %36 = sbr.rel (0) target = $region13
    $region12: #{svd_layer_forward.1} parent=1 // pred_region
      _
    $region13: #{svd_layer_forward.1} parent=1 // pred_fallthru
      _
    // Predicated region
    $region14: #{svd_layer_forward.1} parent=1 // pred_check
      _
    $region15: #{svd_layer_forward.1} parent=1 // pred_check_branch
      %38 = sbr.rel (0) target = $region17
    $region16: #{svd_layer_forward.1} parent=1 // pred_region
      %39 = dma.done [#allocation3], 256
    $region17: #{svd_layer_forward.1} parent=1 // pred_fallthru
      _
    // Predicated region
    $region18: #{svd_layer_forward.1} parent=1 // pred_check
      _
    $region19: #{svd_layer_forward.1} parent=1 // pred_check_branch
      %41 = sbr.rel (0) target = $region21
    $region20: #{svd_layer_forward.1} parent=1 // pred_region
      %42 = dma.done [#allocation6], 2048
    $region21: #{svd_layer_forward.1} parent=1 // pred_fallthru
      _
    %v43 = vld [vmem:[#allocation2] sm:$0xff]
    %v44 = vld [vmem:[#allocation2 + $0x8] sm:$0xff]
    %v45 = vld [vmem:[#allocation5] sm:$0xff]
    %v46 = vld [vmem:[#allocation5 + $0x8] sm:$0xff]
    %v47 = vld [vmem:[#allocation5 + $0x10] sm:$0xff]
    %v48 = vld [vmem:[#allocation5 + $0x18] sm:$0xff]
    %v49 = vld [vmem:[#allocation5 + $0x20] sm:$0xff]
    %v50 = vld [vmem:[#allocation5 + $0x28] sm:$0xff]
    %v51 = vld [vmem:[#allocation5 + $0x30] sm:$0xff]
    %v52 = vld [vmem:[#allocation5 + $0x38] sm:$0xff]
    %v53 = vld [vmem:[#allocation5 + $0x40] sm:$0xff]
    %v54 = vld [vmem:[#allocation5 + $0x48] sm:$0xff]
    %v55 = vld [vmem:[#allocation5 + $0x50] sm:$0xff]
    %v56 = vld [vmem:[#allocation5 + $0x58] sm:$0xff]
    %v57 = vld [vmem:[#allocation5 + $0x60] sm:$0xff]
    %v58 = vld [vmem:[#allocation5 + $0x68] sm:$0xff]
    %v59 = vld [vmem:[#allocation5 + $0x70] sm:$0xff]
    %v60 = vld [vmem:[#allocation5 + $0x78] sm:$0xff]
    %v61 = vld [vmem:[%s2] sm:$0x3]
    %v63 = vlaneseq
    %v64 = vshrl.u32 %v63, 7
    %v65 = vsub.s32 0, %v64
    %v66 = vrot.slane %v61, %v65
    %v67 = vlaneseq
    %v68 = vshrl.u32 %v67, 7
    %v69 = vsub.s32 1, %v68
    %v70 = vrot.slane %v61, %v69
    %vm73 = vcmask 523264
    %v75 = vsel %vm73, %v43, 0
    %v78 = vsel %vm73, %v44, 0
    %80 = vmatprep.subr.mxu0 0.0
    %81 = vmatpush1.msra.mxu0 0.0
    %82 = vmatprep.subr.mxu0 0.0
    %83 = vmatpush1.msra.mxu0 0.0
    %84 = vmatprep.subr.mxu0 0.0
    %85 = vmatpush1.msra.mxu0 0.0
    %86 = vmatprep.subr.mxu0 0.0
    %87 = vmatpush1.msra.mxu0 0.0
    %88 = vmatprep.subr.mxu0 0.0
    %89 = vmatpush1.msra.mxu0 0.0
    %90 = vmatprep.subr.mxu0 0.0
    %91 = vmatpush1.msra.mxu0 0.0
    %92 = vmatprep.subr.mxu0 0.0
    %93 = vmatpush1.msra.mxu0 0.0
    %94 = vmatprep.subr.mxu0 0.0
    %95 = vmatpush1.msra.mxu0 0.0
    %96 = vmatprep.subr.mxu0 %v60
    %97 = vmatpush1.msra.mxu0 %v59
    %98 = vmatprep.subr.mxu0 %v58
    %99 = vmatpush1.msra.mxu0 %v57
    %100 = vmatprep.subr.mxu0 %v56
    %101 = vmatpush1.msra.mxu0 %v55
    %102 = vmatprep.subr.mxu0 %v54
    %103 = vmatpush1.msra.mxu0 %v53
    %104 = vmatprep.subr.mxu0 %v52
    %105 = vmatpush1.msra.mxu0 %v51
    %106 = vmatprep.subr.mxu0 %v50
    %107 = vmatpush1.msra.mxu0 %v49
    %108 = vmatprep.subr.mxu0 %v48
    %109 = vmatpush1.msra.mxu0 %v47
    %110 = vmatprep.subr.mxu0 %v46
    %111 = vmatpush1.msra.mxu0 %v45
    %112 = vmatprep.subr.mxu0 0.0
    %113 = vmatpush2.msra.mxu0 0.0
    %114 = vmatprep.subr.mxu0 0.0
    %115 = vmatpush2.msra.mxu0 0.0
    %116 = vmatprep.subr.mxu0 0.0
    %117 = vmatpush2.msra.mxu0 0.0
    %118 = vmatprep.subr.mxu0 0.0
    %119 = vmatpush2.msra.mxu0 0.0
    %120 = vmatprep.subr.mxu0 0.0
    %121 = vmatpush2.msra.mxu0 0.0
    %122 = vmatprep.subr.mxu0 0.0
    %123 = vmatpush2.msra.mxu0 0.0
    %124 = vmatprep.subr.mxu0 0.0
    %125 = vmatpush2.msra.mxu0 0.0
    %126 = vmatprep.subr.mxu0 0.0
    %127 = vmatpush2.msra.mxu0 0.0
    %128 = vmatprep.subr.mxu0 0.0
    %129 = vmatpush2.msra.mxu0 0.0
    %130 = vmatprep.subr.mxu0 0.0
    %131 = vmatpush2.msra.mxu0 0.0
    %132 = vmatprep.subr.mxu0 0.0
    %133 = vmatpush2.msra.mxu0 0.0
    %134 = vmatprep.subr.mxu0 0.0
    %135 = vmatpush2.msra.mxu0 0.0
    %136 = vmatprep.subr.mxu0 0.0
    %137 = vmatpush2.msra.mxu0 0.0
    %138 = vmatprep.subr.mxu0 0.0
    %139 = vmatpush2.msra.mxu0 0.0
    %140 = vmatprep.subr.mxu0 0.0
    %141 = vmatpush2.msra.mxu0 0.0
    %142 = vmatprep.subr.mxu0 0.0
    %143 = vmatpush2.msra.mxu0 0.0
    %144 = vmatprep.mubr.f32.mxu0 0.0
    %145 = vmatmul.mubr.f32.gmra.mxu0 %v75
    %v146 = vpop.f32.mrf.mxu0
    %v147 = vadd.f32 %v66, %v146
    %v148 = vpop.f32.mrf.mxu0
    %v149 = vadd.f32 %v70, %v148
    %150 = vmatprep.mubr.f32.mxu0 0.0
    %151 = vmatmul.mubr.f32.gmra.mxu0 %v78
    %v152 = vpop.f32.mrf.mxu0
    %v153 = vadd.f32 %v66, %v152
    %v154 = vpop.f32.mrf.mxu0
    %v155 = vadd.f32 %v70, %v154
    %156 = vdwg.mxu0
    %157 = vst [vmem:[#allocation7] sm:$0xff] %v147
    %158 = vst [vmem:[#allocation7 + $0x8] sm:$0xff] %v149
    %159 = vst [vmem:[#allocation7 + $0x10] sm:$0xff] %v153
    %160 = vst [vmem:[#allocation7 + $0x18] sm:$0xff] %v155
    // Predicated region
    $region22: #{svd_layer_forward.1} parent=1 // pred_check
      _
    $region23: #{svd_layer_forward.1} parent=1 // pred_check_branch
      %162 = sbr.rel (0) target = $region25
    $region24: #{svd_layer_forward.1} parent=1 // pred_region
      %s164 = ssub.s32 512, 512
      %165 = vsyncadd [#allocation4], %s164
      %s166 = sshll.u32 [#allocation7], 4
      %s167 = int_to_ptr.vmem [resolvable:$true] %s166
      %172 = dma.vmem_to_hbm [thread:$0]  %s167, 512, %s3, [#allocation4], 256, 256, 16
    $region25: #{svd_layer_forward.1} parent=1 // pred_fallthru
      _
    // Predicated region
    $region26: #{svd_layer_forward.1} parent=1 // pred_check
      _
    $region27: #{svd_layer_forward.1} parent=1 // pred_check_branch
      %174 = sbr.rel (0) target = $region29
    $region28: #{svd_layer_forward.1} parent=1 // pred_region
      %175 = dma.done [#allocation4], 512
    $region29: #{svd_layer_forward.1} parent=1 // pred_fallthru
      _
    %176 = vsyncpa [#allocation3], 1
    %177 = vsyncpa [#allocation6], 1
    %178 = vsyncpa [#allocation4], 1

</llo_original>
